<compile_context>
chip_gen: v7x
topology: tpu7x:2x2x1
jax: 0.10.0
libtpu: 0.0.40
codegen_flags: <defaults>
</compile_context>

<pallas_src>
import jax
import jax.numpy as jnp
from jax.experimental import pallas as pl
from jax.experimental.pallas import tpu as pltpu


def _make_kernel(Dn, De):
    def kernel(node_ref, edge_ref, wn_ref, we_ref, b_ref, out_ref):
        # node_ref: (Bb, N, Dn)   edge_ref: (Bb, N, De)
        # wn_ref:   (1, Dn)       we_ref:   (1, De)       b_ref: (1,) in SMEM
        # out_ref:  (Bb, Dn+De)
        node = node_ref[...].astype(jnp.float32)
        edge = edge_ref[...].astype(jnp.float32)

        # Linear(tanh(features)) decomposed into node/edge halves (lane reduce).
        logits = (
            jnp.sum(jnp.tanh(node) * wn_ref[...], axis=-1, keepdims=True)
            + jnp.sum(jnp.tanh(edge) * we_ref[...], axis=-1, keepdims=True)
            + b_ref[0]
        )                                                       # (Bb, N, 1)

        # softmax over the neighbor axis (dim=1 in the PyTorch module).
        m = jnp.max(logits, axis=1, keepdims=True)              # (Bb, 1, 1)
        e = jnp.exp(logits - m)                                 # (Bb, N, 1)
        denom = jnp.sum(e, axis=1, keepdims=True)               # (Bb, 1, 1)
        sm = e * pl.reciprocal(denom, approx=True)              # (Bb, N, 1)

        # weighted mean over neighbors, per feature half.
        agg_n = jnp.mean(sm * node, axis=1)                     # (Bb, Dn)
        agg_e = jnp.mean(sm * edge, axis=1)                     # (Bb, De)

        out_ref[:, :Dn] = agg_n.astype(out_ref.dtype)
        out_ref[:, Dn:] = agg_e.astype(out_ref.dtype)

    return kernel


def _pick_batch_block(B, N, D, target_bytes=2 * 1024 * 1024):
    """Largest batch block whose node+edge f32 slab is ~target_bytes; keeps the
    (Bb, D) output block legal (Bb % 8 == 0 unless Bb == B) and conservative
    enough for v5e's 16 MiB default scoped VMEM with double buffering."""
    per_b = max(1, N * D * 4)
    bb = max(1, target_bytes // per_b)
    if bb >= B:
        return B
    bb = max(8, (bb // 8) * 8)
    return min(bb, B)


def attention_aggregator(node_features, edge_features, weight, bias, *, block_b=None):
    """node_features: (B, N, Dn), edge_features: (B, N, De),
       weight: (1, Dn+De) [torch nn.Linear layout], bias: (1,)
       returns: (B, Dn+De) float32"""
    B, N, Dn = node_features.shape
    Be, Ne, De = edge_features.shape
    assert (Be, Ne) == (B, N)
    D = Dn + De

    w = weight.reshape(1, D).astype(jnp.float32)
    w_node = w[:, :Dn]
    w_edge = w[:, Dn:]
    b = bias.reshape(1).astype(jnp.float32)

    bb = _pick_batch_block(B, N, D) if block_b is None else block_b
    grid = (pl.cdiv(B, bb),)

    out = pl.pallas_call(
        _make_kernel(Dn, De),
        out_shape=jax.ShapeDtypeStruct((B, D), jnp.float32),
        grid_spec=pltpu.PrefetchScalarGridSpec(
            num_scalar_prefetch=0,
            grid=grid,
            in_specs=[
                pl.BlockSpec((bb, N, Dn), lambda i: (i, 0, 0)),
                pl.BlockSpec((bb, N, De), lambda i: (i, 0, 0)),
                pl.BlockSpec((1, Dn), lambda i: (0, 0)),
                pl.BlockSpec((1, De), lambda i: (0, 0)),
                pl.BlockSpec(memory_space=pltpu.MemorySpace.SMEM),
            ],
            out_specs=pl.BlockSpec((bb, D), lambda i: (i, 0)),
        ),
        compiler_params=pltpu.CompilerParams(
            dimension_semantics=("parallel",),
            vmem_limit_bytes=32 * 1024 * 1024,
        ),
    )(node_features, edge_features, w_node, w_edge, b)
    return out


def _reference(node_features, edge_features, weight, bias):
    feat = jnp.concatenate([node_features, edge_features], axis=-1)
    logits = jnp.tanh(feat) @ weight.reshape(-1, 1) + bias.reshape(1,)  # (B, N, 1)
    sm = jax.nn.softmax(logits, axis=1)
    return jnp.mean(sm * feat, axis=1)


if __name__ == "__main__":
    B, N, Dn, De = 16, 8, 32, 32

    key = jax.random.PRNGKey(0)
    k_node, k_edge, k_w, k_b = jax.random.split(key, 4)

    node_features = jax.random.normal(k_node, (B, N, Dn), dtype=jnp.float32)
    edge_features = jax.random.normal(k_edge, (B, N, De), dtype=jnp.float32)

    # nn.Linear(node_dim + edge_dim, 1): weight (1, Dn+De), bias (1,)
    weight = jax.random.normal(k_w, (1, Dn + De), dtype=jnp.float32) * 0.1
    bias = jax.random.normal(k_b, (1,), dtype=jnp.float32) * 0.1

    ref = _reference(node_features, edge_features, weight, bias)

    # default path: whole (small) batch fits in one grid step
    out = attention_aggregator(node_features, edge_features, weight, bias)
    out = jax.block_until_ready(out)
    assert out.shape == (B, Dn + De)
    assert jnp.allclose(out, ref, atol=2e-3, rtol=2e-3)

    # multi-step grid path: batch blocked in chunks of 8
    out_blk = attention_aggregator(
        node_features, edge_features, weight, bias, block_b=8
    )
    out_blk = jax.block_until_ready(out_blk)
    assert jnp.allclose(out_blk, ref, atol=2e-3, rtol=2e-3)

    print("KERNEL_OK")
</pallas_src>

<mosaic_0001>
module attributes {stable_mosaic.version = 11 : i64} {
  func.func @kernel(%arg0: i32, %arg1: memref<16x8x32xf32, #tpu.memory_space<vmem>>, %arg2: memref<16x8x32xf32, #tpu.memory_space<vmem>>, %arg3: memref<1x32xf32, #tpu.memory_space<vmem>>, %arg4: memref<1x32xf32, #tpu.memory_space<vmem>>, %arg5: memref<1xf32, #tpu.memory_space<smem>>, %arg6: memref<16x64xf32, #tpu.memory_space<vmem>>) attributes {dimension_semantics = [#tpu.dimension_semantics<parallel>], iteration_bounds = array<i64: 1>, scalar_prefetch = 0 : i64, scratch_operands = 0 : i64, tpu.core_type = #tpu.core_type<tc>, window_params = [{transform_indices = @transform_0, window_bounds = array<i64: 16, 8, 32>}, {transform_indices = @transform_1, window_bounds = array<i64: 16, 8, 32>}, {pipeline_mode = #tpu.pipeline_mode<synchronous>, transform_indices = @transform_2, window_bounds = array<i64: 1, 32>}, {pipeline_mode = #tpu.pipeline_mode<synchronous>, transform_indices = @transform_3, window_bounds = array<i64: 1, 32>}, {transform_indices = @transform_4, window_bounds = array<i64: 1>}, {transform_indices = @transform_5, window_bounds = array<i64: 16, 64>}]} {
    %c0 = arith.constant 0 : index
    %c0_0 = arith.constant 0 : index
    %c0_1 = arith.constant 0 : index
    %0 = vector.load %arg1[%c0, %c0_0, %c0_1] : memref<16x8x32xf32, #tpu.memory_space<vmem>>, vector<16x8x32xf32>
    %c0_2 = arith.constant 0 : index
    %c0_3 = arith.constant 0 : index
    %c0_4 = arith.constant 0 : index
    %1 = vector.load %arg2[%c0_2, %c0_3, %c0_4] : memref<16x8x32xf32, #tpu.memory_space<vmem>>, vector<16x8x32xf32>
    %2 = math.tanh %0 : vector<16x8x32xf32>
    %c0_5 = arith.constant 0 : index
    %c0_6 = arith.constant 0 : index
    %3 = vector.load %arg3[%c0_5, %c0_6] : memref<1x32xf32, #tpu.memory_space<vmem>>, vector<1x32xf32>
    %4 = vector.shape_cast %3 : vector<1x32xf32> to vector<1x1x32xf32>
    %5 = vector.broadcast %4 : vector<1x1x32xf32> to vector<16x8x32xf32>
    %6 = arith.mulf %2, %5 : vector<16x8x32xf32>
    %cst = arith.constant dense<0.000000e+00> : vector<16x8xf32>
    %7 = vector.multi_reduction <add>, %6, %cst [2] : vector<16x8x32xf32> to vector<16x8xf32>
    %8 = vector.shape_cast %7 : vector<16x8xf32> to vector<16x8x1xf32>
    %9 = math.tanh %1 : vector<16x8x32xf32>
    %c0_7 = arith.constant 0 : index
    %c0_8 = arith.constant 0 : index
    %10 = vector.load %arg4[%c0_7, %c0_8] : memref<1x32xf32, #tpu.memory_space<vmem>>, vector<1x32xf32>
    %11 = vector.shape_cast %10 : vector<1x32xf32> to vector<1x1x32xf32>
    %12 = vector.broadcast %11 : vector<1x1x32xf32> to vector<16x8x32xf32>
    %13 = arith.mulf %9, %12 : vector<16x8x32xf32>
    %cst_9 = arith.constant dense<0.000000e+00> : vector<16x8xf32>
    %14 = vector.multi_reduction <add>, %13, %cst_9 [2] : vector<16x8x32xf32> to vector<16x8xf32>
    %15 = vector.shape_cast %14 : vector<16x8xf32> to vector<16x8x1xf32>
    %16 = arith.addf %8, %15 : vector<16x8x1xf32>
    %c0_10 = arith.constant 0 : index
    %17 = memref.load %arg5[%c0_10] : memref<1xf32, #tpu.memory_space<smem>>
    %18 = vector.broadcast %17 : f32 to vector<16x8x1xf32>
    %19 = arith.addf %16, %18 : vector<16x8x1xf32>
    %cst_11 = arith.constant dense<0xFF800000> : vector<16x1xf32>
    %20 = vector.multi_reduction <maximumf>, %19, %cst_11 [1] : vector<16x8x1xf32> to vector<16x1xf32>
    %21 = vector.shape_cast %20 : vector<16x1xf32> to vector<16x1x1xf32>
    %22 = vector.broadcast %21 : vector<16x1x1xf32> to vector<16x8x1xf32>
    %23 = arith.subf %19, %22 : vector<16x8x1xf32>
    %24 = math.exp %23 : vector<16x8x1xf32>
    %cst_12 = arith.constant dense<0.000000e+00> : vector<16x1xf32>
    %25 = vector.multi_reduction <add>, %24, %cst_12 [1] : vector<16x8x1xf32> to vector<16x1xf32>
    %26 = vector.shape_cast %25 : vector<16x1xf32> to vector<16x1x1xf32>
    %27 = tpu.reciprocal %26 {approx = true} : vector<16x1x1xf32> -> vector<16x1x1xf32>
    %28 = vector.broadcast %27 : vector<16x1x1xf32> to vector<16x8x1xf32>
    %29 = arith.mulf %24, %28 : vector<16x8x1xf32>
    %30 = vector.broadcast %29 : vector<16x8x1xf32> to vector<16x8x32xf32>
    %31 = arith.mulf %30, %0 : vector<16x8x32xf32>
    %cst_13 = arith.constant dense<0.000000e+00> : vector<16x32xf32>
    %32 = vector.multi_reduction <add>, %31, %cst_13 [1] : vector<16x8x32xf32> to vector<16x32xf32>
    %cst_14 = arith.constant 8.000000e+00 : f32
    %33 = vector.broadcast %cst_14 : f32 to vector<16x32xf32>
    %34 = arith.divf %32, %33 : vector<16x32xf32>
    %35 = vector.broadcast %29 : vector<16x8x1xf32> to vector<16x8x32xf32>
    %36 = arith.mulf %35, %1 : vector<16x8x32xf32>
    %cst_15 = arith.constant dense<0.000000e+00> : vector<16x32xf32>
    %37 = vector.multi_reduction <add>, %36, %cst_15 [1] : vector<16x8x32xf32> to vector<16x32xf32>
    %cst_16 = arith.constant 8.000000e+00 : f32
    %38 = vector.broadcast %cst_16 : f32 to vector<16x32xf32>
    %39 = arith.divf %37, %38 : vector<16x32xf32>
    %c0_17 = arith.constant 0 : index
    %c0_18 = arith.constant 0 : index
    %40 = vector.load %arg6[%c0_17, %c0_18] : memref<16x64xf32, #tpu.memory_space<vmem>>, vector<16x32xf32>
    tpu.vector_store %arg6[%c0_17, %c0_18], %34 {strides = array<i32>} : memref<16x64xf32, #tpu.memory_space<vmem>>, vector<16x32xf32>,
    %c0_19 = arith.constant 0 : index
    %c32 = arith.constant 32 : index
    %41 = vector.load %arg6[%c0_19, %c32] : memref<16x64xf32, #tpu.memory_space<vmem>>, vector<16x32xf32>
    tpu.vector_store %arg6[%c0_19, %c32], %39 {strides = array<i32>} : memref<16x64xf32, #tpu.memory_space<vmem>>, vector<16x32xf32>,
    return
  }
  func.func @transform_0(%arg0: i32) -> (i32, i32, i32) {
    %c0_i32 = arith.constant 0 : i32
    %c0_i32_0 = arith.constant 0 : i32
    %c0_i32_1 = arith.constant 0 : i32
    return %arg0, %c0_i32, %c0_i32_0 : i32, i32, i32
  }
  func.func @transform_1(%arg0: i32) -> (i32, i32, i32) {
    %c0_i32 = arith.constant 0 : i32
    %c0_i32_0 = arith.constant 0 : i32
    %c0_i32_1 = arith.constant 0 : i32
    return %arg0, %c0_i32, %c0_i32_0 : i32, i32, i32
  }
  func.func @transform_2(%arg0: i32) -> (i32, i32) {
    %c0_i32 = arith.constant 0 : i32
    %c0_i32_0 = arith.constant 0 : i32
    %c0_i32_1 = arith.constant 0 : i32
    return %c0_i32, %c0_i32_0 : i32, i32
  }
  func.func @transform_3(%arg0: i32) -> (i32, i32) {
    %c0_i32 = arith.constant 0 : i32
    %c0_i32_0 = arith.constant 0 : i32
    %c0_i32_1 = arith.constant 0 : i32
    return %c0_i32, %c0_i32_0 : i32, i32
  }
  func.func @transform_4(%arg0: i32) -> i32 {
    %c0_i32 = arith.constant 0 : i32
    %c0_i32_0 = arith.constant 0 : i32
    return %c0_i32 : i32
  }
  func.func @transform_5(%arg0: i32) -> (i32, i32) {
    %c0_i32 = arith.constant 0 : i32
    %c0_i32_0 = arith.constant 0 : i32
    return %arg0, %c0_i32 : i32, i32
  }
}

</mosaic_0001>

<llo_original>
// kernel: tpu_custom_call.1
$region0: #{tpu_custom_call.1}
  #allocation0 [shape = 'u32[]', space=smem, size = 0x4, offset = 0x4, fixed_abs, tag = 'smem constant byte address 0x4 - core index']
  #allocation1 [shape = 'u32[144,128]{1,0:T(1,128)}', space=vmem, size = 0x12000, scoped, tag = 'internal scratch']
  #allocation2 [shape = 'f32[1]{0:T(128)S(6)}', space=smem, size = 0x200, scoped, tag = 'scoped memory for tpu_custom_call.1']
  %s0 = inlined_call_operand.hbm [shape: f32[16,8,32], index: 0, kind: input, shape index: {}]
  %s1 = inlined_call_operand.hbm [shape: f32[16,8,32], index: 1, kind: input, shape index: {}]
  %s2 = inlined_call_operand.vmem [shape: f32[1,32], index: 2, kind: input, shape index: {}]
  %s3 = inlined_call_operand.vmem [shape: f32[1,32], index: 3, kind: input, shape index: {}]
  %s4 = inlined_call_operand.<no memory space> [shape: f32[1], index: 4, kind: input, shape index: {}]
  %s5 = inlined_call_operand.hbm [shape: f32[16,64], index: 5, kind: output, shape index: {}]
  %s6 = sld [smem:[#allocation0]]
  $region38: #{tpu_custom_call.1} parent=0
    _
  %s8 = ssub.s32 1, %s6
  %s9 = scalar_select 0, %s8, %s6
  %10 = sst [smem:[#allocation2]] %s4
  $region1: #{tpu_custom_call.1} parent=0
    #allocation3 [shape = 'u8[65536]{0}', space=vmem, size = 0x10000, scoped, tag = 'input window, operand 0, single buffered']
    #allocation4 [shape = 's32[1]{0}', space=sflag, size = 0x4, scoped, tag = 'scoped memory for tpu_custom_call.1']
    #allocation5 [shape = 's32[1]{0}', space=sflag, size = 0x4, scoped, tag = 'scoped memory for tpu_custom_call.1']
    #allocation6 [shape = 'u8[65536]{0}', space=vmem, size = 0x10000, scoped, tag = 'input window, operand 1, single buffered']
    #allocation7 [shape = 's32[1]{0}', space=sflag, size = 0x4, scoped, tag = 'scoped memory for tpu_custom_call.1']
    #allocation8 [shape = 'u8[8192]{0}', space=vmem, size = 0x2000, scoped, tag = 'output window, operand 0, single buffered']
    %11 = vsyncpa [#allocation4], 0
    %12 = vsyncpa [#allocation7], 0
    %13 = vsyncpa [#allocation5], 0
    // Predicated region
    $region2: #{tpu_custom_call.1} parent=1 // pred_check
      _
    $region3: #{tpu_custom_call.1} parent=1 // pred_check_branch
      %15 = sbr.rel (0) target = $region5
    $region4: #{tpu_custom_call.1} parent=1 // pred_region
      %s17 = ssub.s32 2048, 2048
      %18 = vsyncadd [#allocation4], %s17
      %s19 = sshll.u32 [#allocation3], 4
      %s20 = int_to_ptr.vmem [resolvable:$true] %s19
      %25 = dma.hbm_to_vmem [thread:$0]  %s0, 2048, %s20, [#allocation4], 128, 128, 8
    $region5: #{tpu_custom_call.1} parent=1 // pred_fallthru
      _
    // Predicated region
    $region6: #{tpu_custom_call.1} parent=1 // pred_check
      _
    $region7: #{tpu_custom_call.1} parent=1 // pred_check_branch
      %27 = sbr.rel (0) target = $region9
    $region8: #{tpu_custom_call.1} parent=1 // pred_region
      %s29 = ssub.s32 2048, 2048
      %30 = vsyncadd [#allocation7], %s29
      %s31 = sshll.u32 [#allocation6], 4
      %s32 = int_to_ptr.vmem [resolvable:$true] %s31
      %37 = dma.hbm_to_vmem [thread:$0]  %s1, 2048, %s32, [#allocation7], 128, 128, 8
    $region9: #{tpu_custom_call.1} parent=1 // pred_fallthru
      _
    // Predicated region
    $region10: #{tpu_custom_call.1} parent=1 // pred_check
      _
    $region11: #{tpu_custom_call.1} parent=1 // pred_check_branch
      %39 = sbr.rel (0) target = $region13
    $region12: #{tpu_custom_call.1} parent=1 // pred_region
      _
    $region13: #{tpu_custom_call.1} parent=1 // pred_fallthru
      _
    // Predicated region
    $region14: #{tpu_custom_call.1} parent=1 // pred_check
      _
    $region15: #{tpu_custom_call.1} parent=1 // pred_check_branch
      %41 = sbr.rel (0) target = $region17
    $region16: #{tpu_custom_call.1} parent=1 // pred_region
      _
    $region17: #{tpu_custom_call.1} parent=1 // pred_fallthru
      _
    // Predicated region
    $region18: #{tpu_custom_call.1} parent=1 // pred_check
      _
    $region19: #{tpu_custom_call.1} parent=1 // pred_check_branch
      %43 = sbr.rel (0) target = $region21
    $region20: #{tpu_custom_call.1} parent=1 // pred_region
      _
    $region21: #{tpu_custom_call.1} parent=1 // pred_fallthru
      _
    // Predicated region
    $region22: #{tpu_custom_call.1} parent=1 // pred_check
      _
    $region23: #{tpu_custom_call.1} parent=1 // pred_check_branch
      %45 = sbr.rel (0) target = $region25
    $region24: #{tpu_custom_call.1} parent=1 // pred_region
      %46 = dma.done [#allocation4], 2048
    $region25: #{tpu_custom_call.1} parent=1 // pred_fallthru
      _
    // Predicated region
    $region26: #{tpu_custom_call.1} parent=1 // pred_check
      _
    $region27: #{tpu_custom_call.1} parent=1 // pred_check_branch
      %48 = sbr.rel (0) target = $region29
    $region28: #{tpu_custom_call.1} parent=1 // pred_region
      %49 = dma.done [#allocation7], 2048
    $region29: #{tpu_custom_call.1} parent=1 // pred_fallthru
      _
    %v50 = vld [vmem:[#allocation3] sm:$0xff]
    %v51 = vld [vmem:[#allocation3 + $0x8] sm:$0xff]
    %v52 = vld [vmem:[#allocation3 + $0x10] sm:$0xff]
    %v53 = vld [vmem:[#allocation3 + $0x18] sm:$0xff]
    %v54 = vld [vmem:[#allocation3 + $0x20] sm:$0xff]
    %v55 = vld [vmem:[#allocation3 + $0x28] sm:$0xff]
    %v56 = vld [vmem:[#allocation3 + $0x30] sm:$0xff]
    %v57 = vld [vmem:[#allocation3 + $0x38] sm:$0xff]
    %v58 = vld [vmem:[#allocation3 + $0x40] sm:$0xff]
    %v59 = vld [vmem:[#allocation3 + $0x48] sm:$0xff]
    %v60 = vld [vmem:[#allocation3 + $0x50] sm:$0xff]
    %v61 = vld [vmem:[#allocation3 + $0x58] sm:$0xff]
    %v62 = vld [vmem:[#allocation3 + $0x60] sm:$0xff]
    %v63 = vld [vmem:[#allocation3 + $0x68] sm:$0xff]
    %v64 = vld [vmem:[#allocation3 + $0x70] sm:$0xff]
    %v65 = vld [vmem:[#allocation3 + $0x78] sm:$0xff]
    %v66 = vld [vmem:[#allocation6] sm:$0xff]
    %v67 = vld [vmem:[#allocation6 + $0x8] sm:$0xff]
    %v68 = vld [vmem:[#allocation6 + $0x10] sm:$0xff]
    %v69 = vld [vmem:[#allocation6 + $0x18] sm:$0xff]
    %v70 = vld [vmem:[#allocation6 + $0x20] sm:$0xff]
    %v71 = vld [vmem:[#allocation6 + $0x28] sm:$0xff]
    %v72 = vld [vmem:[#allocation6 + $0x30] sm:$0xff]
    %v73 = vld [vmem:[#allocation6 + $0x38] sm:$0xff]
    %v74 = vld [vmem:[#allocation6 + $0x40] sm:$0xff]
    %v75 = vld [vmem:[#allocation6 + $0x48] sm:$0xff]
    %v76 = vld [vmem:[#allocation6 + $0x50] sm:$0xff]
    %v77 = vld [vmem:[#allocation6 + $0x58] sm:$0xff]
    %v78 = vld [vmem:[#allocation6 + $0x60] sm:$0xff]
    %v79 = vld [vmem:[#allocation6 + $0x68] sm:$0xff]
    %v80 = vld [vmem:[#allocation6 + $0x70] sm:$0xff]
    %v81 = vld [vmem:[#allocation6 + $0x78] sm:$0xff]
    %v82 = vtanh.pop %v50
    %v83 = vtanh.pop %v51
    %v84 = vtanh.pop %v52
    %v85 = vtanh.pop %v53
    %v86 = vtanh.pop %v54
    %v87 = vtanh.pop %v55
    %v88 = vtanh.pop %v56
    %v89 = vtanh.pop %v57
    %v90 = vtanh.pop %v58
    %v91 = vtanh.pop %v59
    %v92 = vtanh.pop %v60
    %v93 = vtanh.pop %v61
    %v94 = vtanh.pop %v62
    %v95 = vtanh.pop %v63
    %v96 = vtanh.pop %v64
    %v97 = vtanh.pop %v65
    %v98 = vld [vmem:[%s2] sm:$0x1]
    %v100 = vlaneseq
    %v101 = vshrl.u32 %v100, 7
    %v102 = vsub.s32 0, %v101
    %v103 = vrot.slane %v98, %v102
    %v105 = vmul.f32 %v82, %v103
    %v106 = vmul.f32 %v83, %v103
    %v107 = vmul.f32 %v84, %v103
    %v108 = vmul.f32 %v85, %v103
    %v109 = vmul.f32 %v86, %v103
    %v110 = vmul.f32 %v87, %v103
    %v111 = vmul.f32 %v88, %v103
    %v112 = vmul.f32 %v89, %v103
    %v113 = vmul.f32 %v90, %v103
    %v114 = vmul.f32 %v91, %v103
    %v115 = vmul.f32 %v92, %v103
    %v116 = vmul.f32 %v93, %v103
    %v117 = vmul.f32 %v94, %v103
    %v118 = vmul.f32 %v95, %v103
    %v119 = vmul.f32 %v96, %v103
    %v120 = vmul.f32 %v97, %v103
    %vm121 = vcmask 261120
    %v122 = vsel %vm121, %v105, 0.0
    %123 = vadd.xlane.f32.xlu0 %v122
    %v124 = vpop.xlane.xlu0 %123
    %v125 = vsel %vm121, %v106, 0.0
    %126 = vadd.xlane.f32.xlu0 %v125
    %v127 = vpop.xlane.xlu0 %126
    %v128 = vsel %vm121, %v107, 0.0
    %129 = vadd.xlane.f32.xlu0 %v128
    %v130 = vpop.xlane.xlu0 %129
    %v131 = vsel %vm121, %v108, 0.0
    %132 = vadd.xlane.f32.xlu0 %v131
    %v133 = vpop.xlane.xlu0 %132
    %v134 = vsel %vm121, %v109, 0.0
    %135 = vadd.xlane.f32.xlu0 %v134
    %v136 = vpop.xlane.xlu0 %135
    %v137 = vsel %vm121, %v110, 0.0
    %138 = vadd.xlane.f32.xlu0 %v137
    %v139 = vpop.xlane.xlu0 %138
    %v140 = vsel %vm121, %v111, 0.0
    %141 = vadd.xlane.f32.xlu0 %v140
    %v142 = vpop.xlane.xlu0 %141
    %v143 = vsel %vm121, %v112, 0.0
    %144 = vadd.xlane.f32.xlu0 %v143
    %v145 = vpop.xlane.xlu0 %144
    %v146 = vsel %vm121, %v113, 0.0
    %147 = vadd.xlane.f32.xlu0 %v146
    %v148 = vpop.xlane.xlu0 %147
    %v149 = vsel %vm121, %v114, 0.0
    %150 = vadd.xlane.f32.xlu0 %v149
    %v151 = vpop.xlane.xlu0 %150
    %v152 = vsel %vm121, %v115, 0.0
    %153 = vadd.xlane.f32.xlu0 %v152
    %v154 = vpop.xlane.xlu0 %153
    %v155 = vsel %vm121, %v116, 0.0
    %156 = vadd.xlane.f32.xlu0 %v155
    %v157 = vpop.xlane.xlu0 %156
    %v158 = vsel %vm121, %v117, 0.0
    %159 = vadd.xlane.f32.xlu0 %v158
    %v160 = vpop.xlane.xlu0 %159
    %v161 = vsel %vm121, %v118, 0.0
    %162 = vadd.xlane.f32.xlu0 %v161
    %v163 = vpop.xlane.xlu0 %162
    %v164 = vsel %vm121, %v119, 0.0
    %165 = vadd.xlane.f32.xlu0 %v164
    %v166 = vpop.xlane.xlu0 %165
    %v167 = vsel %vm121, %v120, 0.0
    %168 = vadd.xlane.f32.xlu0 %v167
    %v169 = vpop.xlane.xlu0 %168
    %v170 = vtanh.pop %v66
    %v171 = vtanh.pop %v67
    %v172 = vtanh.pop %v68
    %v173 = vtanh.pop %v69
    %v174 = vtanh.pop %v70
    %v175 = vtanh.pop %v71
    %v176 = vtanh.pop %v72
    %v177 = vtanh.pop %v73
    %v178 = vtanh.pop %v74
    %v179 = vtanh.pop %v75
    %v180 = vtanh.pop %v76
    %v181 = vtanh.pop %v77
    %v182 = vtanh.pop %v78
    %v183 = vtanh.pop %v79
    %v184 = vtanh.pop %v80
    %v185 = vtanh.pop %v81
    %v186 = vld [vmem:[%s3] sm:$0x1]
    %v188 = vlaneseq
    %v189 = vshrl.u32 %v188, 7
    %v190 = vsub.s32 0, %v189
    %v191 = vrot.slane %v186, %v190
    %v193 = vmul.f32 %v170, %v191
    %v194 = vmul.f32 %v171, %v191
    %v195 = vmul.f32 %v172, %v191
    %v196 = vmul.f32 %v173, %v191
    %v197 = vmul.f32 %v174, %v191
    %v198 = vmul.f32 %v175, %v191
    %v199 = vmul.f32 %v176, %v191
    %v200 = vmul.f32 %v177, %v191
    %v201 = vmul.f32 %v178, %v191
    %v202 = vmul.f32 %v179, %v191
    %v203 = vmul.f32 %v180, %v191
    %v204 = vmul.f32 %v181, %v191
    %v205 = vmul.f32 %v182, %v191
    %v206 = vmul.f32 %v183, %v191
    %v207 = vmul.f32 %v184, %v191
    %v208 = vmul.f32 %v185, %v191
    %v209 = vsel %vm121, %v193, 0.0
    %210 = vadd.xlane.f32.xlu0 %v209
    %v211 = vpop.xlane.xlu0 %210
    %v212 = vsel %vm121, %v194, 0.0
    %213 = vadd.xlane.f32.xlu0 %v212
    %v214 = vpop.xlane.xlu0 %213
    %v215 = vsel %vm121, %v195, 0.0
    %216 = vadd.xlane.f32.xlu0 %v215
    %v217 = vpop.xlane.xlu0 %216
    %v218 = vsel %vm121, %v196, 0.0
    %219 = vadd.xlane.f32.xlu0 %v218
    %v220 = vpop.xlane.xlu0 %219
    %v221 = vsel %vm121, %v197, 0.0
    %222 = vadd.xlane.f32.xlu0 %v221
    %v223 = vpop.xlane.xlu0 %222
    %v224 = vsel %vm121, %v198, 0.0
    %225 = vadd.xlane.f32.xlu0 %v224
    %v226 = vpop.xlane.xlu0 %225
    %v227 = vsel %vm121, %v199, 0.0
    %228 = vadd.xlane.f32.xlu0 %v227
    %v229 = vpop.xlane.xlu0 %228
    %v230 = vsel %vm121, %v200, 0.0
    %231 = vadd.xlane.f32.xlu0 %v230
    %v232 = vpop.xlane.xlu0 %231
    %v233 = vsel %vm121, %v201, 0.0
    %234 = vadd.xlane.f32.xlu0 %v233
    %v235 = vpop.xlane.xlu0 %234
    %v236 = vsel %vm121, %v202, 0.0
    %237 = vadd.xlane.f32.xlu0 %v236
    %v238 = vpop.xlane.xlu0 %237
    %v239 = vsel %vm121, %v203, 0.0
    %240 = vadd.xlane.f32.xlu0 %v239
    %v241 = vpop.xlane.xlu0 %240
    %v242 = vsel %vm121, %v204, 0.0
    %243 = vadd.xlane.f32.xlu0 %v242
    %v244 = vpop.xlane.xlu0 %243
    %v245 = vsel %vm121, %v205, 0.0
    %246 = vadd.xlane.f32.xlu0 %v245
    %v247 = vpop.xlane.xlu0 %246
    %v248 = vsel %vm121, %v206, 0.0
    %249 = vadd.xlane.f32.xlu0 %v248
    %v250 = vpop.xlane.xlu0 %249
    %v251 = vsel %vm121, %v207, 0.0
    %252 = vadd.xlane.f32.xlu0 %v251
    %v253 = vpop.xlane.xlu0 %252
    %v254 = vsel %vm121, %v208, 0.0
    %255 = vadd.xlane.f32.xlu0 %v254
    %v256 = vpop.xlane.xlu0 %255
    %v257 = vadd.f32 %v124, %v211
    %v258 = vadd.f32 %v127, %v214
    %v259 = vadd.f32 %v130, %v217
    %v260 = vadd.f32 %v133, %v220
    %v261 = vadd.f32 %v136, %v223
    %v262 = vadd.f32 %v139, %v226
    %v263 = vadd.f32 %v142, %v229
    %v264 = vadd.f32 %v145, %v232
    %v265 = vadd.f32 %v148, %v235
    %v266 = vadd.f32 %v151, %v238
    %v267 = vadd.f32 %v154, %v241
    %v268 = vadd.f32 %v157, %v244
    %v269 = vadd.f32 %v160, %v247
    %v270 = vadd.f32 %v163, %v250
    %v271 = vadd.f32 %v166, %v253
    %v272 = vadd.f32 %v169, %v256
    %s273 = sld [smem:[#allocation2]]
    %v274 = vstv %s273
    %v275 = vadd.f32 %v257, %v274
    %v276 = vadd.f32 %v258, %v274
    %v277 = vadd.f32 %v259, %v274
    %v278 = vadd.f32 %v260, %v274
    %v279 = vadd.f32 %v261, %v274
    %v280 = vadd.f32 %v262, %v274
    %v281 = vadd.f32 %v263, %v274
    %v282 = vadd.f32 %v264, %v274
    %v283 = vadd.f32 %v265, %v274
    %v284 = vadd.f32 %v266, %v274
    %v285 = vadd.f32 %v267, %v274
    %v286 = vadd.f32 %v268, %v274
    %v287 = vadd.f32 %v269, %v274
    %v288 = vadd.f32 %v270, %v274
    %v289 = vadd.f32 %v271, %v274
    %v290 = vadd.f32 %v272, %v274
    %v291 = vrot.slane %v275, 4
    %v292 = vmax.f32 %v275, %v291
    %v293 = vrot.slane %v292, 2
    %v294 = vmax.f32 %v292, %v293
    %v295 = vrot.slane %v294, 1
    %v296 = vmax.f32 %v294, %v295
    %v297 = vrot.slane %v276, 4
    %v298 = vmax.f32 %v276, %v297
    %v299 = vrot.slane %v298, 2
    %v300 = vmax.f32 %v298, %v299
    %v301 = vrot.slane %v300, 1
    %v302 = vmax.f32 %v300, %v301
    %v303 = vrot.slane %v277, 4
    %v304 = vmax.f32 %v277, %v303
    %v305 = vrot.slane %v304, 2
    %v306 = vmax.f32 %v304, %v305
    %v307 = vrot.slane %v306, 1
    %v308 = vmax.f32 %v306, %v307
    %v309 = vrot.slane %v278, 4
    %v310 = vmax.f32 %v278, %v309
    %v311 = vrot.slane %v310, 2
    %v312 = vmax.f32 %v310, %v311
    %v313 = vrot.slane %v312, 1
    %v314 = vmax.f32 %v312, %v313
    %v315 = vrot.slane %v279, 4
    %v316 = vmax.f32 %v279, %v315
    %v317 = vrot.slane %v316, 2
    %v318 = vmax.f32 %v316, %v317
    %v319 = vrot.slane %v318, 1
    %v320 = vmax.f32 %v318, %v319
    %v321 = vrot.slane %v280, 4
    %v322 = vmax.f32 %v280, %v321
    %v323 = vrot.slane %v322, 2
    %v324 = vmax.f32 %v322, %v323
    %v325 = vrot.slane %v324, 1
    %v326 = vmax.f32 %v324, %v325
    %v327 = vrot.slane %v281, 4
    %v328 = vmax.f32 %v281, %v327
    %v329 = vrot.slane %v328, 2
    %v330 = vmax.f32 %v328, %v329
    %v331 = vrot.slane %v330, 1
    %v332 = vmax.f32 %v330, %v331
    %v333 = vrot.slane %v282, 4
    %v334 = vmax.f32 %v282, %v333
    %v335 = vrot.slane %v334, 2
    %v336 = vmax.f32 %v334, %v335
    %v337 = vrot.slane %v336, 1
    %v338 = vmax.f32 %v336, %v337
    %v339 = vrot.slane %v283, 4
    %v340 = vmax.f32 %v283, %v339
    %v341 = vrot.slane %v340, 2
    %v342 = vmax.f32 %v340, %v341
    %v343 = vrot.slane %v342, 1
    %v344 = vmax.f32 %v342, %v343
    %v345 = vrot.slane %v284, 4
    %v346 = vmax.f32 %v284, %v345
    %v347 = vrot.slane %v346, 2
    %v348 = vmax.f32 %v346, %v347
    %v349 = vrot.slane %v348, 1
    %v350 = vmax.f32 %v348, %v349
    %v351 = vrot.slane %v285, 4
    %v352 = vmax.f32 %v285, %v351
    %v353 = vrot.slane %v352, 2
    %v354 = vmax.f32 %v352, %v353
    %v355 = vrot.slane %v354, 1
    %v356 = vmax.f32 %v354, %v355
    %v357 = vrot.slane %v286, 4
    %v358 = vmax.f32 %v286, %v357
    %v359 = vrot.slane %v358, 2
    %v360 = vmax.f32 %v358, %v359
    %v361 = vrot.slane %v360, 1
    %v362 = vmax.f32 %v360, %v361
    %v363 = vrot.slane %v287, 4
    %v364 = vmax.f32 %v287, %v363
    %v365 = vrot.slane %v364, 2
    %v366 = vmax.f32 %v364, %v365
    %v367 = vrot.slane %v366, 1
    %v368 = vmax.f32 %v366, %v367
    %v369 = vrot.slane %v288, 4
    %v370 = vmax.f32 %v288, %v369
    %v371 = vrot.slane %v370, 2
    %v372 = vmax.f32 %v370, %v371
    %v373 = vrot.slane %v372, 1
    %v374 = vmax.f32 %v372, %v373
    %v375 = vrot.slane %v289, 4
    %v376 = vmax.f32 %v289, %v375
    %v377 = vrot.slane %v376, 2
    %v378 = vmax.f32 %v376, %v377
    %v379 = vrot.slane %v378, 1
    %v380 = vmax.f32 %v378, %v379
    %v381 = vrot.slane %v290, 4
    %v382 = vmax.f32 %v290, %v381
    %v383 = vrot.slane %v382, 2
    %v384 = vmax.f32 %v382, %v383
    %v385 = vrot.slane %v384, 1
    %v386 = vmax.f32 %v384, %v385
    %v387 = vsub.f32 %v275, %v296
    %v388 = vsub.f32 %v276, %v302
    %v389 = vsub.f32 %v277, %v308
    %v390 = vsub.f32 %v278, %v314
    %v391 = vsub.f32 %v279, %v320
    %v392 = vsub.f32 %v280, %v326
    %v393 = vsub.f32 %v281, %v332
    %v394 = vsub.f32 %v282, %v338
    %v395 = vsub.f32 %v283, %v344
    %v396 = vsub.f32 %v284, %v350
    %v397 = vsub.f32 %v285, %v356
    %v398 = vsub.f32 %v286, %v362
    %v399 = vsub.f32 %v287, %v368
    %v400 = vsub.f32 %v288, %v374
    %v401 = vsub.f32 %v289, %v380
    %v402 = vsub.f32 %v290, %v386
    %v403 = vmul.f32 %v387, 1.442695
    %v404 = vpow.pop %v403
    %v405 = vmul.f32 %v388, 1.442695
    %v406 = vpow.pop %v405
    %v407 = vmul.f32 %v389, 1.442695
    %v408 = vpow.pop %v407
    %v409 = vmul.f32 %v390, 1.442695
    %v410 = vpow.pop %v409
    %v411 = vmul.f32 %v391, 1.442695
    %v412 = vpow.pop %v411
    %v413 = vmul.f32 %v392, 1.442695
    %v414 = vpow.pop %v413
    %v415 = vmul.f32 %v393, 1.442695
    %v416 = vpow.pop %v415
    %v417 = vmul.f32 %v394, 1.442695
    %v418 = vpow.pop %v417
    %v419 = vmul.f32 %v395, 1.442695
    %v420 = vpow.pop %v419
    %v421 = vmul.f32 %v396, 1.442695
    %v422 = vpow.pop %v421
    %v423 = vmul.f32 %v397, 1.442695
    %v424 = vpow.pop %v423
    %v425 = vmul.f32 %v398, 1.442695
    %v426 = vpow.pop %v425
    %v427 = vmul.f32 %v399, 1.442695
    %v428 = vpow.pop %v427
    %v429 = vmul.f32 %v400, 1.442695
    %v430 = vpow.pop %v429
    %v431 = vmul.f32 %v401, 1.442695
    %v432 = vpow.pop %v431
    %v433 = vmul.f32 %v402, 1.442695
    %v434 = vpow.pop %v433
    %v435 = vrot.slane %v404, 4
    %v436 = vadd.f32 %v404, %v435
    %v437 = vrot.slane %v436, 2
    %v438 = vadd.f32 %v436, %v437
    %v439 = vrot.slane %v438, 1
    %v440 = vadd.f32 %v438, %v439
    %v441 = vrot.slane %v406, 4
    %v442 = vadd.f32 %v406, %v441
    %v443 = vrot.slane %v442, 2
    %v444 = vadd.f32 %v442, %v443
    %v445 = vrot.slane %v444, 1
    %v446 = vadd.f32 %v444, %v445
    %v447 = vrot.slane %v408, 4
    %v448 = vadd.f32 %v408, %v447
    %v449 = vrot.slane %v448, 2
    %v450 = vadd.f32 %v448, %v449
    %v451 = vrot.slane %v450, 1
    %v452 = vadd.f32 %v450, %v451
    %v453 = vrot.slane %v410, 4
    %v454 = vadd.f32 %v410, %v453
    %v455 = vrot.slane %v454, 2
    %v456 = vadd.f32 %v454, %v455
    %v457 = vrot.slane %v456, 1
    %v458 = vadd.f32 %v456, %v457
    %v459 = vrot.slane %v412, 4
    %v460 = vadd.f32 %v412, %v459
    %v461 = vrot.slane %v460, 2
    %v462 = vadd.f32 %v460, %v461
    %v463 = vrot.slane %v462, 1
    %v464 = vadd.f32 %v462, %v463
    %v465 = vrot.slane %v414, 4
    %v466 = vadd.f32 %v414, %v465
    %v467 = vrot.slane %v466, 2
    %v468 = vadd.f32 %v466, %v467
    %v469 = vrot.slane %v468, 1
    %v470 = vadd.f32 %v468, %v469
    %v471 = vrot.slane %v416, 4
    %v472 = vadd.f32 %v416, %v471
    %v473 = vrot.slane %v472, 2
    %v474 = vadd.f32 %v472, %v473
    %v475 = vrot.slane %v474, 1
    %v476 = vadd.f32 %v474, %v475
    %v477 = vrot.slane %v418, 4
    %v478 = vadd.f32 %v418, %v477
    %v479 = vrot.slane %v478, 2
    %v480 = vadd.f32 %v478, %v479
    %v481 = vrot.slane %v480, 1
    %v482 = vadd.f32 %v480, %v481
    %v483 = vrot.slane %v420, 4
    %v484 = vadd.f32 %v420, %v483
    %v485 = vrot.slane %v484, 2
    %v486 = vadd.f32 %v484, %v485
    %v487 = vrot.slane %v486, 1
    %v488 = vadd.f32 %v486, %v487
    %v489 = vrot.slane %v422, 4
    %v490 = vadd.f32 %v422, %v489
    %v491 = vrot.slane %v490, 2
    %v492 = vadd.f32 %v490, %v491
    %v493 = vrot.slane %v492, 1
    %v494 = vadd.f32 %v492, %v493
    %v495 = vrot.slane %v424, 4
    %v496 = vadd.f32 %v424, %v495
    %v497 = vrot.slane %v496, 2
    %v498 = vadd.f32 %v496, %v497
    %v499 = vrot.slane %v498, 1
    %v500 = vadd.f32 %v498, %v499
    %v501 = vrot.slane %v426, 4
    %v502 = vadd.f32 %v426, %v501
    %v503 = vrot.slane %v502, 2
    %v504 = vadd.f32 %v502, %v503
    %v505 = vrot.slane %v504, 1
    %v506 = vadd.f32 %v504, %v505
    %v507 = vrot.slane %v428, 4
    %v508 = vadd.f32 %v428, %v507
    %v509 = vrot.slane %v508, 2
    %v510 = vadd.f32 %v508, %v509
    %v511 = vrot.slane %v510, 1
    %v512 = vadd.f32 %v510, %v511
    %v513 = vrot.slane %v430, 4
    %v514 = vadd.f32 %v430, %v513
    %v515 = vrot.slane %v514, 2
    %v516 = vadd.f32 %v514, %v515
    %v517 = vrot.slane %v516, 1
    %v518 = vadd.f32 %v516, %v517
    %v519 = vrot.slane %v432, 4
    %v520 = vadd.f32 %v432, %v519
    %v521 = vrot.slane %v520, 2
    %v522 = vadd.f32 %v520, %v521
    %v523 = vrot.slane %v522, 1
    %v524 = vadd.f32 %v522, %v523
    %v525 = vrot.slane %v434, 4
    %v526 = vadd.f32 %v434, %v525
    %v527 = vrot.slane %v526, 2
    %v528 = vadd.f32 %v526, %v527
    %v529 = vrot.slane %v528, 1
    %v530 = vadd.f32 %v528, %v529
    %v531 = vrcp.pop %v440
    %v532 = vrcp.pop %v446
    %v533 = vrcp.pop %v452
    %v534 = vrcp.pop %v458
    %v535 = vrcp.pop %v464
    %v536 = vrcp.pop %v470
    %v537 = vrcp.pop %v476
    %v538 = vrcp.pop %v482
    %v539 = vrcp.pop %v488
    %v540 = vrcp.pop %v494
    %v541 = vrcp.pop %v500
    %v542 = vrcp.pop %v506
    %v543 = vrcp.pop %v512
    %v544 = vrcp.pop %v518
    %v545 = vrcp.pop %v524
    %v546 = vrcp.pop %v530
    %v547 = vmul.f32 %v404, %v531
    %v548 = vmul.f32 %v406, %v532
    %v549 = vmul.f32 %v408, %v533
    %v550 = vmul.f32 %v410, %v534
    %v551 = vmul.f32 %v412, %v535
    %v552 = vmul.f32 %v414, %v536
    %v553 = vmul.f32 %v416, %v537
    %v554 = vmul.f32 %v418, %v538
    %v555 = vmul.f32 %v420, %v539
    %v556 = vmul.f32 %v422, %v540
    %v557 = vmul.f32 %v424, %v541
    %v558 = vmul.f32 %v426, %v542
    %v559 = vmul.f32 %v428, %v543
    %v560 = vmul.f32 %v430, %v544
    %v561 = vmul.f32 %v432, %v545
    %v562 = vmul.f32 %v434, %v546
    %v563 = vmul.f32 %v547, %v50
    %v564 = vmul.f32 %v548, %v51
    %v565 = vmul.f32 %v549, %v52
    %v566 = vmul.f32 %v550, %v53
    %v567 = vmul.f32 %v551, %v54
    %v568 = vmul.f32 %v552, %v55
    %v569 = vmul.f32 %v553, %v56
    %v570 = vmul.f32 %v554, %v57
    %v571 = vmul.f32 %v555, %v58
    %v572 = vmul.f32 %v556, %v59
    %v573 = vmul.f32 %v557, %v60
    %v574 = vmul.f32 %v558, %v61
    %v575 = vmul.f32 %v559, %v62
    %v576 = vmul.f32 %v560, %v63
    %v577 = vmul.f32 %v561, %v64
    %v578 = vmul.f32 %v562, %v65
    %v579 = vsel %vm121, %v563, 0.0
    %v580 = vrot.slane %v579, 4
    %v581 = vadd.f32 %v579, %v580
    %v582 = vrot.slane %v581, 2
    %v583 = vadd.f32 %v581, %v582
    %v584 = vrot.slane %v583, 1
    %v585 = vadd.f32 %v583, %v584
    %v586 = vsel %vm121, %v564, 0.0
    %v587 = vrot.slane %v586, 4
    %v588 = vadd.f32 %v586, %v587
    %v589 = vrot.slane %v588, 2
    %v590 = vadd.f32 %v588, %v589
    %v591 = vrot.slane %v590, 1
    %v592 = vadd.f32 %v590, %v591
    %v593 = vsel %vm121, %v565, 0.0
    %v594 = vrot.slane %v593, 4
    %v595 = vadd.f32 %v593, %v594
    %v596 = vrot.slane %v595, 2
    %v597 = vadd.f32 %v595, %v596
    %v598 = vrot.slane %v597, 1
    %v599 = vadd.f32 %v597, %v598
    %v600 = vsel %vm121, %v566, 0.0
    %v601 = vrot.slane %v600, 4
    %v602 = vadd.f32 %v600, %v601
    %v603 = vrot.slane %v602, 2
    %v604 = vadd.f32 %v602, %v603
    %v605 = vrot.slane %v604, 1
    %v606 = vadd.f32 %v604, %v605
    %v607 = vsel %vm121, %v567, 0.0
    %v608 = vrot.slane %v607, 4
    %v609 = vadd.f32 %v607, %v608
    %v610 = vrot.slane %v609, 2
    %v611 = vadd.f32 %v609, %v610
    %v612 = vrot.slane %v611, 1
    %v613 = vadd.f32 %v611, %v612
    %v614 = vsel %vm121, %v568, 0.0
    %v615 = vrot.slane %v614, 4
    %v616 = vadd.f32 %v614, %v615
    %v617 = vrot.slane %v616, 2
    %v618 = vadd.f32 %v616, %v617
    %v619 = vrot.slane %v618, 1
    %v620 = vadd.f32 %v618, %v619
    %v621 = vsel %vm121, %v569, 0.0
    %v622 = vrot.slane %v621, 4
    %v623 = vadd.f32 %v621, %v622
    %v624 = vrot.slane %v623, 2
    %v625 = vadd.f32 %v623, %v624
    %v626 = vrot.slane %v625, 1
    %v627 = vadd.f32 %v625, %v626
    %v628 = vsel %vm121, %v570, 0.0
    %v629 = vrot.slane %v628, 4
    %v630 = vadd.f32 %v628, %v629
    %v631 = vrot.slane %v630, 2
    %v632 = vadd.f32 %v630, %v631
    %v633 = vrot.slane %v632, 1
    %v634 = vadd.f32 %v632, %v633
    %v635 = vsel %vm121, %v571, 0.0
    %v636 = vrot.slane %v635, 4
    %v637 = vadd.f32 %v635, %v636
    %v638 = vrot.slane %v637, 2
    %v639 = vadd.f32 %v637, %v638
    %v640 = vrot.slane %v639, 1
    %v641 = vadd.f32 %v639, %v640
    %v642 = vsel %vm121, %v572, 0.0
    %v643 = vrot.slane %v642, 4
    %v644 = vadd.f32 %v642, %v643
    %v645 = vrot.slane %v644, 2
    %v646 = vadd.f32 %v644, %v645
    %v647 = vrot.slane %v646, 1
    %v648 = vadd.f32 %v646, %v647
    %v649 = vsel %vm121, %v573, 0.0
    %v650 = vrot.slane %v649, 4
    %v651 = vadd.f32 %v649, %v650
    %v652 = vrot.slane %v651, 2
    %v653 = vadd.f32 %v651, %v652
    %v654 = vrot.slane %v653, 1
    %v655 = vadd.f32 %v653, %v654
    %v656 = vsel %vm121, %v574, 0.0
    %v657 = vrot.slane %v656, 4
    %v658 = vadd.f32 %v656, %v657
    %v659 = vrot.slane %v658, 2
    %v660 = vadd.f32 %v658, %v659
    %v661 = vrot.slane %v660, 1
    %v662 = vadd.f32 %v660, %v661
    %v663 = vsel %vm121, %v575, 0.0
    %v664 = vrot.slane %v663, 4
    %v665 = vadd.f32 %v663, %v664
    %v666 = vrot.slane %v665, 2
    %v667 = vadd.f32 %v665, %v666
    %v668 = vrot.slane %v667, 1
    %v669 = vadd.f32 %v667, %v668
    %v670 = vsel %vm121, %v576, 0.0
    %v671 = vrot.slane %v670, 4
    %v672 = vadd.f32 %v670, %v671
    %v673 = vrot.slane %v672, 2
    %v674 = vadd.f32 %v672, %v673
    %v675 = vrot.slane %v674, 1
    %v676 = vadd.f32 %v674, %v675
    %v677 = vsel %vm121, %v577, 0.0
    %v678 = vrot.slane %v677, 4
    %v679 = vadd.f32 %v677, %v678
    %v680 = vrot.slane %v679, 2
    %v681 = vadd.f32 %v679, %v680
    %v682 = vrot.slane %v681, 1
    %v683 = vadd.f32 %v681, %v682
    %v684 = vsel %vm121, %v578, 0.0
    %v685 = vrot.slane %v684, 4
    %v686 = vadd.f32 %v684, %v685
    %v687 = vrot.slane %v686, 2
    %v688 = vadd.f32 %v686, %v687
    %v689 = vrot.slane %v688, 1
    %v690 = vadd.f32 %v688, %v689
    %v691 = vrcp.pop 8.0
    %v692 = vmul.f32 %v585, %v691
    %v693 = vmul.f32 %v592, %v691
    %v694 = vmul.f32 %v599, %v691
    %v695 = vmul.f32 %v606, %v691
    %v696 = vmul.f32 %v613, %v691
    %v697 = vmul.f32 %v620, %v691
    %v698 = vmul.f32 %v627, %v691
    %v699 = vmul.f32 %v634, %v691
    %v700 = vmul.f32 %v641, %v691
    %v701 = vmul.f32 %v648, %v691
    %v702 = vmul.f32 %v655, %v691
    %v703 = vmul.f32 %v662, %v691
    %v704 = vmul.f32 %v669, %v691
    %v705 = vmul.f32 %v676, %v691
    %v706 = vmul.f32 %v683, %v691
    %v707 = vmul.f32 %v690, %v691
    %v708 = vmul.f32 %v547, %v66
    %v709 = vmul.f32 %v548, %v67
    %v710 = vmul.f32 %v549, %v68
    %v711 = vmul.f32 %v550, %v69
    %v712 = vmul.f32 %v551, %v70
    %v713 = vmul.f32 %v552, %v71
    %v714 = vmul.f32 %v553, %v72
    %v715 = vmul.f32 %v554, %v73
    %v716 = vmul.f32 %v555, %v74
    %v717 = vmul.f32 %v556, %v75
    %v718 = vmul.f32 %v557, %v76
    %v719 = vmul.f32 %v558, %v77
    %v720 = vmul.f32 %v559, %v78
    %v721 = vmul.f32 %v560, %v79
    %v722 = vmul.f32 %v561, %v80
    %v723 = vmul.f32 %v562, %v81
    %v724 = vsel %vm121, %v708, 0.0
    %v725 = vrot.slane %v724, 4
    %v726 = vadd.f32 %v724, %v725
    %v727 = vrot.slane %v726, 2
    %v728 = vadd.f32 %v726, %v727
    %v729 = vrot.slane %v728, 1
    %v730 = vadd.f32 %v728, %v729
    %v731 = vsel %vm121, %v709, 0.0
    %v732 = vrot.slane %v731, 4
    %v733 = vadd.f32 %v731, %v732
    %v734 = vrot.slane %v733, 2
    %v735 = vadd.f32 %v733, %v734
    %v736 = vrot.slane %v735, 1
    %v737 = vadd.f32 %v735, %v736
    %v738 = vsel %vm121, %v710, 0.0
    %v739 = vrot.slane %v738, 4
    %v740 = vadd.f32 %v738, %v739
    %v741 = vrot.slane %v740, 2
    %v742 = vadd.f32 %v740, %v741
    %v743 = vrot.slane %v742, 1
    %v744 = vadd.f32 %v742, %v743
    %v745 = vsel %vm121, %v711, 0.0
    %v746 = vrot.slane %v745, 4
    %v747 = vadd.f32 %v745, %v746
    %v748 = vrot.slane %v747, 2
    %v749 = vadd.f32 %v747, %v748
    %v750 = vrot.slane %v749, 1
    %v751 = vadd.f32 %v749, %v750
    %v752 = vsel %vm121, %v712, 0.0
    %v753 = vrot.slane %v752, 4
    %v754 = vadd.f32 %v752, %v753
    %v755 = vrot.slane %v754, 2
    %v756 = vadd.f32 %v754, %v755
    %v757 = vrot.slane %v756, 1
    %v758 = vadd.f32 %v756, %v757
    %v759 = vsel %vm121, %v713, 0.0
    %v760 = vrot.slane %v759, 4
    %v761 = vadd.f32 %v759, %v760
    %v762 = vrot.slane %v761, 2
    %v763 = vadd.f32 %v761, %v762
    %v764 = vrot.slane %v763, 1
    %v765 = vadd.f32 %v763, %v764
    %v766 = vsel %vm121, %v714, 0.0
    %v767 = vrot.slane %v766, 4
    %v768 = vadd.f32 %v766, %v767
    %v769 = vrot.slane %v768, 2
    %v770 = vadd.f32 %v768, %v769
    %v771 = vrot.slane %v770, 1
    %v772 = vadd.f32 %v770, %v771
    %v773 = vsel %vm121, %v715, 0.0
    %v774 = vrot.slane %v773, 4
    %v775 = vadd.f32 %v773, %v774
    %v776 = vrot.slane %v775, 2
    %v777 = vadd.f32 %v775, %v776
    %v778 = vrot.slane %v777, 1
    %v779 = vadd.f32 %v777, %v778
    %v780 = vsel %vm121, %v716, 0.0
    %v781 = vrot.slane %v780, 4
    %v782 = vadd.f32 %v780, %v781
    %v783 = vrot.slane %v782, 2
    %v784 = vadd.f32 %v782, %v783
    %v785 = vrot.slane %v784, 1
    %v786 = vadd.f32 %v784, %v785
    %v787 = vsel %vm121, %v717, 0.0
    %v788 = vrot.slane %v787, 4
    %v789 = vadd.f32 %v787, %v788
    %v790 = vrot.slane %v789, 2
    %v791 = vadd.f32 %v789, %v790
    %v792 = vrot.slane %v791, 1
    %v793 = vadd.f32 %v791, %v792
    %v794 = vsel %vm121, %v718, 0.0
    %v795 = vrot.slane %v794, 4
    %v796 = vadd.f32 %v794, %v795
    %v797 = vrot.slane %v796, 2
    %v798 = vadd.f32 %v796, %v797
    %v799 = vrot.slane %v798, 1
    %v800 = vadd.f32 %v798, %v799
    %v801 = vsel %vm121, %v719, 0.0
    %v802 = vrot.slane %v801, 4
    %v803 = vadd.f32 %v801, %v802
    %v804 = vrot.slane %v803, 2
    %v805 = vadd.f32 %v803, %v804
    %v806 = vrot.slane %v805, 1
    %v807 = vadd.f32 %v805, %v806
    %v808 = vsel %vm121, %v720, 0.0
    %v809 = vrot.slane %v808, 4
    %v810 = vadd.f32 %v808, %v809
    %v811 = vrot.slane %v810, 2
    %v812 = vadd.f32 %v810, %v811
    %v813 = vrot.slane %v812, 1
    %v814 = vadd.f32 %v812, %v813
    %v815 = vsel %vm121, %v721, 0.0
    %v816 = vrot.slane %v815, 4
    %v817 = vadd.f32 %v815, %v816
    %v818 = vrot.slane %v817, 2
    %v819 = vadd.f32 %v817, %v818
    %v820 = vrot.slane %v819, 1
    %v821 = vadd.f32 %v819, %v820
    %v822 = vsel %vm121, %v722, 0.0
    %v823 = vrot.slane %v822, 4
    %v824 = vadd.f32 %v822, %v823
    %v825 = vrot.slane %v824, 2
    %v826 = vadd.f32 %v824, %v825
    %v827 = vrot.slane %v826, 1
    %v828 = vadd.f32 %v826, %v827
    %v829 = vsel %vm121, %v723, 0.0
    %v830 = vrot.slane %v829, 4
    %v831 = vadd.f32 %v829, %v830
    %v832 = vrot.slane %v831, 2
    %v833 = vadd.f32 %v831, %v832
    %v834 = vrot.slane %v833, 1
    %v835 = vadd.f32 %v833, %v834
    %v836 = vmul.f32 %v730, %v691
    %v837 = vmul.f32 %v737, %v691
    %v838 = vmul.f32 %v744, %v691
    %v839 = vmul.f32 %v751, %v691
    %v840 = vmul.f32 %v758, %v691
    %v841 = vmul.f32 %v765, %v691
    %v842 = vmul.f32 %v772, %v691
    %v843 = vmul.f32 %v779, %v691
    %v844 = vmul.f32 %v786, %v691
    %v845 = vmul.f32 %v793, %v691
    %v846 = vmul.f32 %v800, %v691
    %v847 = vmul.f32 %v807, %v691
    %v848 = vmul.f32 %v814, %v691
    %v849 = vmul.f32 %v821, %v691
    %v850 = vmul.f32 %v828, %v691
    %v851 = vmul.f32 %v835, %v691
    %vm868 = vcmask 1041409
    %v869 = vsel %vm868, %v693, %v692
    %vm870 = vcmask 1042434
    %v871 = vsel %vm870, %v694, %v869
    %vm872 = vcmask 1043459
    %v873 = vsel %vm872, %v695, %v871
    %vm874 = vcmask 1044484
    %v875 = vsel %vm874, %v696, %v873
    %vm876 = vcmask 1045509
    %v877 = vsel %vm876, %v697, %v875
    %vm878 = vcmask 1046534
    %v879 = vsel %vm878, %v698, %v877
    %vm880 = vcmask 1047559
    %v881 = vsel %vm880, %v699, %v879
    %v882 = vsel %vm868, %v701, %v700
    %v883 = vsel %vm870, %v702, %v882
    %v884 = vsel %vm872, %v703, %v883
    %v885 = vsel %vm874, %v704, %v884
    %v886 = vsel %vm876, %v705, %v885
    %v887 = vsel %vm878, %v706, %v886
    %v888 = vsel %vm880, %v707, %v887
    %891 = vst.msk [vmem:[#allocation8] sm:$0xff] %vm121, %v881
    %892 = vst.msk [vmem:[#allocation8 + $0x8] sm:$0xff] %vm121, %v888
    %v909 = vsel %vm868, %v837, %v836
    %v910 = vsel %vm870, %v838, %v909
    %v911 = vsel %vm872, %v839, %v910
    %v912 = vsel %vm874, %v840, %v911
    %v913 = vsel %vm876, %v841, %v912
    %v914 = vsel %vm878, %v842, %v913
    %v915 = vsel %vm880, %v843, %v914
    %v916 = vsel %vm868, %v845, %v844
    %v917 = vsel %vm870, %v846, %v916
    %v918 = vsel %vm872, %v847, %v917
    %v919 = vsel %vm874, %v848, %v918
    %v920 = vsel %vm876, %v849, %v919
    %v921 = vsel %vm878, %v850, %v920
    %v922 = vsel %vm880, %v851, %v921
    %923 = vrot.lane.b32.xlu0 %v915, 32
    %v924 = vpop.permute.xlu0 %923
    %925 = vrot.lane.b32.xlu0 %v922, 32
    %v926 = vpop.permute.xlu0 %925
    %vm929 = vcmask 523520
    %930 = vst.msk [vmem:[#allocation8] sm:$0xff] %vm929, %v924
    %931 = vst.msk [vmem:[#allocation8 + $0x8] sm:$0xff] %vm929, %v926
    // Predicated region
    $region30: #{tpu_custom_call.1} parent=1 // pred_check
      _
    $region31: #{tpu_custom_call.1} parent=1 // pred_check_branch
      %933 = sbr.rel (0) target = $region33
    $region32: #{tpu_custom_call.1} parent=1 // pred_region
      %s935 = ssub.s32 256, 256
      %936 = vsyncadd [#allocation5], %s935
      %s937 = sshll.u32 [#allocation8], 4
      %s938 = int_to_ptr.vmem [resolvable:$true] %s937
      %943 = dma.vmem_to_hbm [thread:$0]  %s938, 256, %s5, [#allocation5], 128, 128, 8
    $region33: #{tpu_custom_call.1} parent=1 // pred_fallthru
      _
    // Predicated region
    $region34: #{tpu_custom_call.1} parent=1 // pred_check
      _
    $region35: #{tpu_custom_call.1} parent=1 // pred_check_branch
      %945 = sbr.rel (0) target = $region37
    $region36: #{tpu_custom_call.1} parent=1 // pred_region
      %946 = dma.done [#allocation5], 256
    $region37: #{tpu_custom_call.1} parent=1 // pred_fallthru
      _
    %947 = vsyncpa [#allocation4], 1
    %948 = vsyncpa [#allocation7], 1
    %949 = vsyncpa [#allocation5], 1

</llo_original>
